<compile_context>
chip_gen: v5e
topology: v5e:2x2
jax: 0.10.0
libtpu: 0.0.40
codegen_flags: <defaults>
</compile_context>

<pallas_src>
import jax
import jax.numpy as jnp
from jax.experimental import pallas as pl
from jax.experimental.pallas import tpu as pltpu

LANE = 128  # lane width / padded feature size for every layer


def dqn_kernel(x_ref, w_ref, b_ref, o_ref):
    # x_ref: (TM, 128)   w_ref: (3, 128, 128)   b_ref: (8, 128)   o_ref: (TM, 128)
    x = x_ref[...]
    b1 = b_ref[pl.ds(0, 1), :]          # (1, 128)
    b2 = b_ref[pl.ds(1, 1), :]
    b3 = b_ref[pl.ds(2, 1), :]

    # fc1 + sigmoid (padded hidden columns become sigmoid(0)=0.5 but multiply
    # zero rows of the next weight, so they contribute nothing).
    h1 = jax.nn.sigmoid(
        jnp.dot(x, w_ref[0], preferred_element_type=jnp.float32) + b1)
    # fc2 + sigmoid
    h2 = jax.nn.sigmoid(
        jnp.dot(h1, w_ref[1], preferred_element_type=jnp.float32) + b2)
    # out (no activation); padded output columns are exactly 0.
    o = jnp.dot(h2, w_ref[2], preferred_element_type=jnp.float32) + b3
    o_ref[...] = o.astype(o_ref.dtype)


def _pad_to(a, shape):
    pads = [(0, t - s) for s, t in zip(a.shape, shape)]
    return jnp.pad(a, pads)


def deep_q_network(x, w1, b1, w2, b2, w3, b3):
    """x: (B, inputs) f32. Weights (in, out), biases (1, out). Returns (B, outputs)."""
    B, n_in = x.shape
    h1_dim, h2_dim = w1.shape[1], w2.shape[1]
    n_out = w3.shape[1]

    # Batch tile: sublane-aligned; 128 rows per MXU pass once the batch is big.
    if B >= 128:
        TM = 128
    else:
        TM = max(8, ((B + 7) // 8) * 8)
    B_pad = ((B + TM - 1) // TM) * TM

    # Lane-dense, zero-padded operands (3 buffers total).
    xp = _pad_to(x.astype(jnp.float32), (B_pad, LANE))
    w_all = jnp.stack([
        _pad_to(w1.astype(jnp.float32), (LANE, LANE)),
        _pad_to(w2.astype(jnp.float32), (LANE, LANE)),
        _pad_to(w3.astype(jnp.float32), (LANE, LANE)),
    ])  # (3, 128, 128)
    b_all = jnp.concatenate([
        _pad_to(b1.reshape(1, -1).astype(jnp.float32), (1, LANE)),
        _pad_to(b2.reshape(1, -1).astype(jnp.float32), (1, LANE)),
        _pad_to(b3.reshape(1, -1).astype(jnp.float32), (1, LANE)),
        jnp.zeros((5, LANE), jnp.float32),
    ], axis=0)  # (8, 128)

    grid = (B_pad // TM,)
    flops = 2 * B * (n_in * h1_dim + h1_dim * h2_dim + h2_dim * n_out)
    transcendentals = B * (h1_dim + h2_dim)
    bytes_accessed = 4 * (xp.size + w_all.size + b_all.size + B_pad * LANE)

    out_padded = pl.pallas_call(
        dqn_kernel,
        out_shape=jax.ShapeDtypeStruct((B_pad, LANE), jnp.float32),
        grid_spec=pltpu.PrefetchScalarGridSpec(
            num_scalar_prefetch=0,
            grid=grid,
            in_specs=[
                pl.BlockSpec((TM, LANE), lambda i: (i, 0)),          # activations
                pl.BlockSpec((3, LANE, LANE), lambda i: (0, 0, 0)),  # weights (grid-invariant)
                pl.BlockSpec((8, LANE), lambda i: (0, 0)),           # biases  (grid-invariant)
            ],
            out_specs=pl.BlockSpec((TM, LANE), lambda i: (i, 0)),
        ),
        compiler_params=pltpu.CompilerParams(
            dimension_semantics=("parallel",)),
        cost_estimate=pl.CostEstimate(
            flops=flops,
            transcendentals=transcendentals,
            bytes_accessed=bytes_accessed),
    )(xp, w_all, b_all)

    # Slice back to the real batch / action dims.
    return out_padded[:B, :n_out]


def init_linear_params(key, fan_in, fan_out):
    """Mimic PyTorch nn.Linear default init: U(-1/sqrt(fan_in), 1/sqrt(fan_in))."""
    kw, kb = jax.random.split(key)
    bound = 1.0 / jnp.sqrt(float(fan_in))
    # stored transposed relative to PyTorch: (in_features, out_features)
    w = jax.random.uniform(kw, (fan_in, fan_out), jnp.float32, -bound, bound)
    b = jax.random.uniform(kb, (1, fan_out), jnp.float32, -bound, bound)
    return w, b


def reference_forward(x, w1, b1, w2, b2, w3, b3):
    h1 = jax.nn.sigmoid(x @ w1 + b1)
    h2 = jax.nn.sigmoid(h1 @ w2 + b2)
    return h2 @ w3 + b3


if __name__ == "__main__":
    # CartPole-like sizes: 4 state inputs, 2 actions, small batch.
    batch, n_inputs, n_outputs = 2, 4, 2

    key = jax.random.PRNGKey(0)
    kx, k1, k2, k3 = jax.random.split(key, 4)

    x = jax.random.normal(kx, (batch, n_inputs), jnp.float32)
    w1, b1 = init_linear_params(k1, n_inputs, 16)
    w2, b2 = init_linear_params(k2, 16, 8)
    w3, b3 = init_linear_params(k3, 8, n_outputs)

    out = deep_q_network(x, w1, b1, w2, b2, w3, b3)
    out = jax.block_until_ready(out)

    ref = reference_forward(x, w1, b1, w2, b2, w3, b3)
    assert out.shape == (batch, n_outputs)
    assert jnp.allclose(out, ref, atol=1e-5, rtol=1e-5), "mismatch vs. reference"

    print("KERNEL_OK")
</pallas_src>

<mosaic_0001>
module attributes {stable_mosaic.version = 11 : i64} {
  func.func @dqn_kernel(%arg0: i32, %arg1: memref<8x128xf32, #tpu.memory_space<vmem>>, %arg2: memref<3x128x128xf32, #tpu.memory_space<vmem>>, %arg3: memref<8x128xf32, #tpu.memory_space<vmem>>, %arg4: memref<8x128xf32, #tpu.memory_space<vmem>>) attributes {dimension_semantics = [#tpu.dimension_semantics<parallel>], iteration_bounds = array<i64: 1>, scalar_prefetch = 0 : i64, scratch_operands = 0 : i64, tpu.core_type = #tpu.core_type<tc>, window_params = [{transform_indices = @transform_0, window_bounds = array<i64: 8, 128>}, {pipeline_mode = #tpu.pipeline_mode<synchronous>, transform_indices = @transform_1, window_bounds = array<i64: 3, 128, 128>}, {pipeline_mode = #tpu.pipeline_mode<synchronous>, transform_indices = @transform_2, window_bounds = array<i64: 8, 128>}, {transform_indices = @transform_3, window_bounds = array<i64: 8, 128>}]} {
    %c0 = arith.constant 0 : index
    %c0_0 = arith.constant 0 : index
    %0 = vector.load %arg1[%c0, %c0_0] : memref<8x128xf32, #tpu.memory_space<vmem>>, vector<8x128xf32>
    %c0_1 = arith.constant 0 : index
    %c0_2 = arith.constant 0 : index
    %1 = vector.load %arg3[%c0_1, %c0_2] : memref<8x128xf32, #tpu.memory_space<vmem>>, vector<1x128xf32>
    %c1 = arith.constant 1 : index
    %c0_3 = arith.constant 0 : index
    %2 = vector.load %arg3[%c1, %c0_3] : memref<8x128xf32, #tpu.memory_space<vmem>>, vector<1x128xf32>
    %c2 = arith.constant 2 : index
    %c0_4 = arith.constant 0 : index
    %3 = vector.load %arg3[%c2, %c0_4] : memref<8x128xf32, #tpu.memory_space<vmem>>, vector<1x128xf32>
    %c0_5 = arith.constant 0 : index
    %c0_6 = arith.constant 0 : index
    %c0_7 = arith.constant 0 : index
    %4 = vector.load %arg2[%c0_5, %c0_6, %c0_7] : memref<3x128x128xf32, #tpu.memory_space<vmem>>, vector<1x128x128xf32>
    %5 = vector.shape_cast %4 : vector<1x128x128xf32> to vector<128x128xf32>
    %cst = arith.constant dense<0.000000e+00> : vector<8x128xf32>
    %6 = tpu.matmul %0, %5, %cst {dimension_numbers = #tpu.dot_dimension_numbers<[1], [0], [0], [1], [0, 0, 1, 1], [], []>} : vector<8x128xf32>, vector<128x128xf32>, vector<8x128xf32> -> vector<8x128xf32>
    %7 = vector.broadcast %1 : vector<1x128xf32> to vector<8x128xf32>
    %8 = arith.addf %6, %7 : vector<8x128xf32>
    %9 = arith.negf %8 : vector<8x128xf32>
    %10 = math.exp %9 : vector<8x128xf32>
    %cst_8 = arith.constant 1.000000e+00 : f32
    %11 = vector.broadcast %cst_8 : f32 to vector<8x128xf32>
    %12 = arith.addf %11, %10 : vector<8x128xf32>
    %13 = arith.divf %11, %12 : vector<8x128xf32>
    %c1_9 = arith.constant 1 : index
    %c0_10 = arith.constant 0 : index
    %c0_11 = arith.constant 0 : index
    %14 = vector.load %arg2[%c1_9, %c0_10, %c0_11] : memref<3x128x128xf32, #tpu.memory_space<vmem>>, vector<1x128x128xf32>
    %15 = vector.shape_cast %14 : vector<1x128x128xf32> to vector<128x128xf32>
    %cst_12 = arith.constant dense<0.000000e+00> : vector<8x128xf32>
    %16 = tpu.matmul %13, %15, %cst_12 {dimension_numbers = #tpu.dot_dimension_numbers<[1], [0], [0], [1], [0, 0, 1, 1], [], []>} : vector<8x128xf32>, vector<128x128xf32>, vector<8x128xf32> -> vector<8x128xf32>
    %17 = vector.broadcast %2 : vector<1x128xf32> to vector<8x128xf32>
    %18 = arith.addf %16, %17 : vector<8x128xf32>
    %19 = arith.negf %18 : vector<8x128xf32>
    %20 = math.exp %19 : vector<8x128xf32>
    %cst_13 = arith.constant 1.000000e+00 : f32
    %21 = vector.broadcast %cst_13 : f32 to vector<8x128xf32>
    %22 = arith.addf %21, %20 : vector<8x128xf32>
    %23 = arith.divf %21, %22 : vector<8x128xf32>
    %c2_14 = arith.constant 2 : index
    %c0_15 = arith.constant 0 : index
    %c0_16 = arith.constant 0 : index
    %24 = vector.load %arg2[%c2_14, %c0_15, %c0_16] : memref<3x128x128xf32, #tpu.memory_space<vmem>>, vector<1x128x128xf32>
    %25 = vector.shape_cast %24 : vector<1x128x128xf32> to vector<128x128xf32>
    %cst_17 = arith.constant dense<0.000000e+00> : vector<8x128xf32>
    %26 = tpu.matmul %23, %25, %cst_17 {dimension_numbers = #tpu.dot_dimension_numbers<[1], [0], [0], [1], [0, 0, 1, 1], [], []>} : vector<8x128xf32>, vector<128x128xf32>, vector<8x128xf32> -> vector<8x128xf32>
    %27 = vector.broadcast %3 : vector<1x128xf32> to vector<8x128xf32>
    %28 = arith.addf %26, %27 : vector<8x128xf32>
    %c0_18 = arith.constant 0 : index
    %c0_19 = arith.constant 0 : index
    %29 = vector.load %arg4[%c0_18, %c0_19] : memref<8x128xf32, #tpu.memory_space<vmem>>, vector<8x128xf32>
    tpu.vector_store %arg4[%c0_18, %c0_19], %28 {strides = array<i32>} : memref<8x128xf32, #tpu.memory_space<vmem>>, vector<8x128xf32>,
    return
  }
  func.func @transform_0(%arg0: i32) -> (i32, i32) {
    %c0_i32 = arith.constant 0 : i32
    %c0_i32_0 = arith.constant 0 : i32
    return %arg0, %c0_i32 : i32, i32
  }
  func.func @transform_1(%arg0: i32) -> (i32, i32, i32) {
    %c0_i32 = arith.constant 0 : i32
    %c0_i32_0 = arith.constant 0 : i32
    %c0_i32_1 = arith.constant 0 : i32
    %c0_i32_2 = arith.constant 0 : i32
    return %c0_i32, %c0_i32_0, %c0_i32_1 : i32, i32, i32
  }
  func.func @transform_2(%arg0: i32) -> (i32, i32) {
    %c0_i32 = arith.constant 0 : i32
    %c0_i32_0 = arith.constant 0 : i32
    %c0_i32_1 = arith.constant 0 : i32
    return %c0_i32, %c0_i32_0 : i32, i32
  }
  func.func @transform_3(%arg0: i32) -> (i32, i32) {
    %c0_i32 = arith.constant 0 : i32
    %c0_i32_0 = arith.constant 0 : i32
    return %arg0, %c0_i32 : i32, i32
  }
}

</mosaic_0001>

<llo_original>
// kernel: tpu_custom_call.1
$region0: #{tpu_custom_call.1}
  #allocation0 [shape = 'u32[]', space=smem, size = 0x4, offset = 0x4, fixed_abs, tag = 'smem constant byte address 0x4 - core index']
  #allocation1 [shape = 'u32[72,128]{1,0:T(1,128)}', space=vmem, size = 0x9000, scoped, tag = 'internal scratch']
  %s0 = inlined_call_operand.hbm [shape: f32[8,128], index: 0, kind: input, shape index: {}]
  %s1 = inlined_call_operand.hbm [shape: f32[3,128,128], index: 1, kind: input, shape index: {}]
  %s2 = inlined_call_operand.hbm [shape: f32[8,128], index: 2, kind: input, shape index: {}]
  %s3 = inlined_call_operand.hbm [shape: f32[8,128], index: 3, kind: output, shape index: {}]
  %s4 = sld [smem:[#allocation0]]
  $region34: #{tpu_custom_call.1} parent=0
    _
  %s6 = ssub.s32 1, %s4
  %s7 = scalar_select 0, %s6, %s4
  $region1: #{tpu_custom_call.1} parent=0
    #allocation2 [shape = 'u8[4096]{0}', space=vmem, size = 0x1000, scoped, tag = 'input window, operand 0, single buffered']
    #allocation3 [shape = 's32[1]{0}', space=sflag, size = 0x4, scoped, tag = 'scoped memory for tpu_custom_call.1']
    #allocation4 [shape = 's32[1]{0}', space=sflag, size = 0x4, scoped, tag = 'scoped memory for tpu_custom_call.1']
    #allocation5 [shape = 'u8[196608]{0}', space=vmem, size = 0x30000, scoped, tag = 'input window, operand 1, single buffered']
    #allocation6 [shape = 's32[1]{0}', space=sflag, size = 0x4, scoped, tag = 'scoped memory for tpu_custom_call.1']
    #allocation7 [shape = 'u8[4096]{0}', space=vmem, size = 0x1000, scoped, tag = 'input window, operand 2, single buffered']
    #allocation8 [shape = 'u8[4096]{0}', space=vmem, size = 0x1000, scoped, tag = 'output window, operand 0, single buffered']
    %8 = vsyncpa [#allocation3], 0
    %9 = vsyncpa [#allocation6], 0
    %10 = vsyncpa [#allocation4], 0
    // Predicated region
    $region2: #{tpu_custom_call.1} parent=1 // pred_check
      _
    $region3: #{tpu_custom_call.1} parent=1 // pred_check_branch
      %12 = sbr.rel (0) target = $region5
    $region4: #{tpu_custom_call.1} parent=1 // pred_region
      %14 = vsyncadd [#allocation3], 0
      %s16 = sshll.u32 %s0, 4
      %s17 = int_to_ptr.hbm [resolvable:$true] %s16
      %s18 = sshll.u32 [#allocation2], 4
      %s19 = int_to_ptr.vmem [resolvable:$true] %s18
      %21 = dma.hbm_to_vmem [thread:$0]  %s17, 128, %s19, [#allocation3]
    $region5: #{tpu_custom_call.1} parent=1 // pred_fallthru
      _
    // Predicated region
    $region6: #{tpu_custom_call.1} parent=1 // pred_check
      _
    $region7: #{tpu_custom_call.1} parent=1 // pred_check_branch
      %23 = sbr.rel (0) target = $region9
    $region8: #{tpu_custom_call.1} parent=1 // pred_region
      %25 = vsyncadd [#allocation6], 0
      %s26 = sshll.u32 %s1, 4
      %s27 = int_to_ptr.hbm [resolvable:$true] %s26
      %s28 = sshll.u32 [#allocation5], 4
      %s29 = int_to_ptr.vmem [resolvable:$true] %s28
      %34 = dma.hbm_to_vmem [thread:$0]  %s27, 6144, %s29, [#allocation6], 128, 128, 8
    $region9: #{tpu_custom_call.1} parent=1 // pred_fallthru
      _
    // Predicated region
    $region10: #{tpu_custom_call.1} parent=1 // pred_check
      _
    $region11: #{tpu_custom_call.1} parent=1 // pred_check_branch
      %36 = sbr.rel (0) target = $region13
    $region12: #{tpu_custom_call.1} parent=1 // pred_region
      %38 = vsyncadd [#allocation6], 0
      %s40 = sshll.u32 %s2, 4
      %s41 = int_to_ptr.hbm [resolvable:$true] %s40
      %s42 = sshll.u32 [#allocation7], 4
      %s43 = int_to_ptr.vmem [resolvable:$true] %s42
      %45 = dma.hbm_to_vmem [thread:$0]  %s41, 128, %s43, [#allocation6]
    $region13: #{tpu_custom_call.1} parent=1 // pred_fallthru
      _
    // Predicated region
    $region14: #{tpu_custom_call.1} parent=1 // pred_check
      _
    $region15: #{tpu_custom_call.1} parent=1 // pred_check_branch
      %47 = sbr.rel (0) target = $region17
    $region16: #{tpu_custom_call.1} parent=1 // pred_region
      %49 = dma.done [#allocation3], 128
    $region17: #{tpu_custom_call.1} parent=1 // pred_fallthru
      _
    // Predicated region
    $region18: #{tpu_custom_call.1} parent=1 // pred_check
      _
    $region19: #{tpu_custom_call.1} parent=1 // pred_check_branch
      %51 = sbr.rel (0) target = $region21
    $region20: #{tpu_custom_call.1} parent=1 // pred_region
      %53 = dma.done [#allocation6], 6144
    $region21: #{tpu_custom_call.1} parent=1 // pred_fallthru
      _
    // Predicated region
    $region22: #{tpu_custom_call.1} parent=1 // pred_check
      _
    $region23: #{tpu_custom_call.1} parent=1 // pred_check_branch
      %55 = sbr.rel (0) target = $region25
    $region24: #{tpu_custom_call.1} parent=1 // pred_region
      %57 = dma.done [#allocation6], 128
    $region25: #{tpu_custom_call.1} parent=1 // pred_fallthru
      _
    %v58 = vld [vmem:[#allocation2] sm:$0xff]
    %v59 = vld [vmem:[#allocation7] sm:$0x1]
    %v60 = vld [vmem:[#allocation7 + $0x1] sm:$0x1]
    %v61 = vld [vmem:[#allocation7 + $0x2] sm:$0x1]
    %v62 = vld [vmem:[#allocation5] sm:$0xff]
    %v63 = vld [vmem:[#allocation5 + $0x8] sm:$0xff]
    %v64 = vld [vmem:[#allocation5 + $0x10] sm:$0xff]
    %v65 = vld [vmem:[#allocation5 + $0x18] sm:$0xff]
    %v66 = vld [vmem:[#allocation5 + $0x20] sm:$0xff]
    %v67 = vld [vmem:[#allocation5 + $0x28] sm:$0xff]
    %v68 = vld [vmem:[#allocation5 + $0x30] sm:$0xff]
    %v69 = vld [vmem:[#allocation5 + $0x38] sm:$0xff]
    %v70 = vld [vmem:[#allocation5 + $0x40] sm:$0xff]
    %v71 = vld [vmem:[#allocation5 + $0x48] sm:$0xff]
    %v72 = vld [vmem:[#allocation5 + $0x50] sm:$0xff]
    %v73 = vld [vmem:[#allocation5 + $0x58] sm:$0xff]
    %v74 = vld [vmem:[#allocation5 + $0x60] sm:$0xff]
    %v75 = vld [vmem:[#allocation5 + $0x68] sm:$0xff]
    %v76 = vld [vmem:[#allocation5 + $0x70] sm:$0xff]
    %v77 = vld [vmem:[#allocation5 + $0x78] sm:$0xff]
    %v78 = vperm.slane %v59, 0
    %79 = vmatpush.msra.mxu0 %v77
    %80 = vmatpush.msra.mxu0 %v76
    %81 = vmatpush.msra.mxu0 %v75
    %82 = vmatpush.msra.mxu0 %v74
    %83 = vmatpush.msra.mxu0 %v73
    %84 = vmatpush.msra.mxu0 %v72
    %85 = vmatpush.msra.mxu0 %v71
    %86 = vmatpush.msra.mxu0 %v70
    %87 = vmatpush.msra.mxu0 %v69
    %88 = vmatpush.msra.mxu0 %v68
    %89 = vmatpush.msra.mxu0 %v67
    %90 = vmatpush.msra.mxu0 %v66
    %91 = vmatpush.msra.mxu0 %v65
    %92 = vmatpush.msra.mxu0 %v64
    %93 = vmatpush.msra.mxu0 %v63
    %94 = vmatpush.msra.mxu0 %v62
    %95 = vmatmul.f32.gmra.mxu0 %v58
    %v96 = vpop.f32.mrf.mxu0
    %v97 = vadd.f32 %v78, %v96
    %98 = vdwg.mxu0
    %v99 = vxor.u32 %v97, 2147483648
    %v100 = vmul.f32 %v99, 1.442695
    %v101 = vpow.pop %v100
    %v102 = vadd.f32 %v101, 1.0
    %v103 = vrcp.pop %v102
    %v104 = vmul.f32 %v102, %v103
    %v105 = vsub.f32 1.0, %v104
    %v106 = vmul.f32 %v103, %v105
    %v107 = vadd.f32 %v103, %v106
    %vm108 = vweird.f32 %v102
    %vm109 = vweird.f32 %v103
    %vm110 = vmor %vm108, %vm109
    %v111 = vsel %vm110, %v103, %v107
    %v112 = vand.u32 2147483647, %v102
    %vm113 = vcmp.eq.f32.partialorder %v112, 8.507059e+37
    %v114 = vand.u32 %v102, 2147483648
    %v115 = vor.u32 1.1754944e-38, %v114
    %v116 = vsel %vm113, %v115, %v111
    %v117 = vmul.f32 1.0, %v116
    %s118 = scalar_lea.vmem [#allocation5], 128
    %v119 = vld [vmem:[%s118] sm:$0xff]
    %v120 = vld [vmem:[%s118 + $0x8] sm:$0xff]
    %v121 = vld [vmem:[%s118 + $0x10] sm:$0xff]
    %v122 = vld [vmem:[%s118 + $0x18] sm:$0xff]
    %v123 = vld [vmem:[%s118 + $0x20] sm:$0xff]
    %v124 = vld [vmem:[%s118 + $0x28] sm:$0xff]
    %v125 = vld [vmem:[%s118 + $0x30] sm:$0xff]
    %v126 = vld [vmem:[%s118 + $0x38] sm:$0xff]
    %v127 = vld [vmem:[%s118 + $0x40] sm:$0xff]
    %v128 = vld [vmem:[%s118 + $0x48] sm:$0xff]
    %v129 = vld [vmem:[%s118 + $0x50] sm:$0xff]
    %v130 = vld [vmem:[%s118 + $0x58] sm:$0xff]
    %v131 = vld [vmem:[%s118 + $0x60] sm:$0xff]
    %v132 = vld [vmem:[%s118 + $0x68] sm:$0xff]
    %v133 = vld [vmem:[%s118 + $0x70] sm:$0xff]
    %v134 = vld [vmem:[%s118 + $0x78] sm:$0xff]
    %v135 = vperm.slane %v60, 0
    %136 = vmatpush.msra.mxu0 %v134
    %137 = vmatpush.msra.mxu0 %v133
    %138 = vmatpush.msra.mxu0 %v132
    %139 = vmatpush.msra.mxu0 %v131
    %140 = vmatpush.msra.mxu0 %v130
    %141 = vmatpush.msra.mxu0 %v129
    %142 = vmatpush.msra.mxu0 %v128
    %143 = vmatpush.msra.mxu0 %v127
    %144 = vmatpush.msra.mxu0 %v126
    %145 = vmatpush.msra.mxu0 %v125
    %146 = vmatpush.msra.mxu0 %v124
    %147 = vmatpush.msra.mxu0 %v123
    %148 = vmatpush.msra.mxu0 %v122
    %149 = vmatpush.msra.mxu0 %v121
    %150 = vmatpush.msra.mxu0 %v120
    %151 = vmatpush.msra.mxu0 %v119
    %152 = vmatmul.f32.gmra.mxu0 %v117
    %v153 = vpop.f32.mrf.mxu0
    %v154 = vadd.f32 %v135, %v153
    %155 = vdwg.mxu0
    %v156 = vxor.u32 %v154, 2147483648
    %v157 = vmul.f32 %v156, 1.442695
    %v158 = vpow.pop %v157
    %v159 = vadd.f32 %v158, 1.0
    %v160 = vrcp.pop %v159
    %v161 = vmul.f32 %v159, %v160
    %v162 = vsub.f32 1.0, %v161
    %v163 = vmul.f32 %v160, %v162
    %v164 = vadd.f32 %v160, %v163
    %vm165 = vweird.f32 %v159
    %vm166 = vweird.f32 %v160
    %vm167 = vmor %vm165, %vm166
    %v168 = vsel %vm167, %v160, %v164
    %v169 = vand.u32 2147483647, %v159
    %vm170 = vcmp.eq.f32.partialorder %v169, 8.507059e+37
    %v171 = vand.u32 %v159, 2147483648
    %v172 = vor.u32 1.1754944e-38, %v171
    %v173 = vsel %vm170, %v172, %v168
    %v174 = vmul.f32 1.0, %v173
    %s175 = scalar_lea.vmem [#allocation5], 256
    %v176 = vld [vmem:[%s175] sm:$0xff]
    %v177 = vld [vmem:[%s175 + $0x8] sm:$0xff]
    %v178 = vld [vmem:[%s175 + $0x10] sm:$0xff]
    %v179 = vld [vmem:[%s175 + $0x18] sm:$0xff]
    %v180 = vld [vmem:[%s175 + $0x20] sm:$0xff]
    %v181 = vld [vmem:[%s175 + $0x28] sm:$0xff]
    %v182 = vld [vmem:[%s175 + $0x30] sm:$0xff]
    %v183 = vld [vmem:[%s175 + $0x38] sm:$0xff]
    %v184 = vld [vmem:[%s175 + $0x40] sm:$0xff]
    %v185 = vld [vmem:[%s175 + $0x48] sm:$0xff]
    %v186 = vld [vmem:[%s175 + $0x50] sm:$0xff]
    %v187 = vld [vmem:[%s175 + $0x58] sm:$0xff]
    %v188 = vld [vmem:[%s175 + $0x60] sm:$0xff]
    %v189 = vld [vmem:[%s175 + $0x68] sm:$0xff]
    %v190 = vld [vmem:[%s175 + $0x70] sm:$0xff]
    %v191 = vld [vmem:[%s175 + $0x78] sm:$0xff]
    %v192 = vperm.slane %v61, 0
    %193 = vmatpush.msra.mxu0 %v191
    %194 = vmatpush.msra.mxu0 %v190
    %195 = vmatpush.msra.mxu0 %v189
    %196 = vmatpush.msra.mxu0 %v188
    %197 = vmatpush.msra.mxu0 %v187
    %198 = vmatpush.msra.mxu0 %v186
    %199 = vmatpush.msra.mxu0 %v185
    %200 = vmatpush.msra.mxu0 %v184
    %201 = vmatpush.msra.mxu0 %v183
    %202 = vmatpush.msra.mxu0 %v182
    %203 = vmatpush.msra.mxu0 %v181
    %204 = vmatpush.msra.mxu0 %v180
    %205 = vmatpush.msra.mxu0 %v179
    %206 = vmatpush.msra.mxu0 %v178
    %207 = vmatpush.msra.mxu0 %v177
    %208 = vmatpush.msra.mxu0 %v176
    %209 = vmatmul.f32.gmra.mxu0 %v174
    %v210 = vpop.f32.mrf.mxu0
    %v211 = vadd.f32 %v192, %v210
    %212 = vdwg.mxu0
    %213 = vst [vmem:[#allocation8] sm:$0xff] %v211
    // Predicated region
    $region26: #{tpu_custom_call.1} parent=1 // pred_check
      _
    $region27: #{tpu_custom_call.1} parent=1 // pred_check_branch
      %215 = sbr.rel (0) target = $region29
    $region28: #{tpu_custom_call.1} parent=1 // pred_region
      %217 = vsyncadd [#allocation4], 0
      %s219 = sshll.u32 [#allocation8], 4
      %s220 = int_to_ptr.vmem [resolvable:$true] %s219
      %s221 = sshll.u32 %s3, 4
      %s222 = int_to_ptr.hbm [resolvable:$true] %s221
      %224 = dma.vmem_to_hbm [thread:$0]  %s220, 128, %s222, [#allocation4]
    $region29: #{tpu_custom_call.1} parent=1 // pred_fallthru
      _
    // Predicated region
    $region30: #{tpu_custom_call.1} parent=1 // pred_check
      _
    $region31: #{tpu_custom_call.1} parent=1 // pred_check_branch
      %226 = sbr.rel (0) target = $region33
    $region32: #{tpu_custom_call.1} parent=1 // pred_region
      %228 = dma.done [#allocation4], 128
    $region33: #{tpu_custom_call.1} parent=1 // pred_fallthru
      _
    %229 = vsyncpa [#allocation3], 1
    %230 = vsyncpa [#allocation6], 1
    %231 = vsyncpa [#allocation4], 1

</llo_original>
